<compile_context>
chip_gen: v5e
topology: v5e:2x2
jax: 0.10.0
libtpu: 0.0.40
codegen_flags: <defaults>
</compile_context>

<pallas_src>
import functools
import math

import jax
import jax.numpy as jnp
import numpy as np
from jax.experimental import pallas as pl
from jax.experimental.pallas import tpu as pltpu


# ----------------------------------------------------------------------------
# Parameter (buffer) setup — deterministic, matches torch __init__ exactly.
# ----------------------------------------------------------------------------
def make_positional_encoding_table(max_len: int, d_model: int) -> jnp.ndarray:
    """Returns pe of shape (max_len, 1, d_model), float32."""
    position = jnp.arange(max_len, dtype=jnp.float32)[:, None]              # (L, 1)
    div_term = jnp.exp(
        jnp.arange(0, d_model, 2, dtype=jnp.float32) * (-math.log(10000.0) / d_model)
    )                                                                        # (D/2,)
    angles = position * div_term                                             # (L, D/2)
    pe = jnp.zeros((max_len, d_model), dtype=jnp.float32)
    pe = pe.at[:, 0::2].set(jnp.sin(angles))
    pe = pe.at[:, 1::2].set(jnp.cos(angles))
    return pe[:, None, :]                                                    # (L, 1, D)


# ----------------------------------------------------------------------------
# Counter-based uint32 hash (lowbias32): unique counter -> well-mixed bits.
# ----------------------------------------------------------------------------
def _hash_u32(x):
    x = x ^ (x >> 16)
    x = x * jnp.uint32(0x7FEB352D)
    x = x ^ (x >> 15)
    x = x * jnp.uint32(0x846CA68B)
    x = x ^ (x >> 16)
    return x


# ----------------------------------------------------------------------------
# Pallas kernel: elementwise add of PE table (broadcast over batch) + dropout.
# ----------------------------------------------------------------------------
def _pe_dropout_kernel(seed_ref, x_ref, pe_ref, o_ref, *, keep_prob: float):
    # x_ref: (TS, B, D); pe_ref: (TS, 1, D) -> broadcast over batch in-register.
    y = x_ref[...].astype(jnp.float32) + pe_ref[...].astype(jnp.float32)

    if keep_prob < 1.0:
        ts, b, d = x_ref.shape
        shape = (ts, b, d)
        # Global flat element index (unique across the whole grid) -> every
        # tile gets an independent dropout mask.
        row = jax.lax.broadcasted_iota(jnp.int32, shape, 0) + pl.program_id(0) * ts
        bat = jax.lax.broadcasted_iota(jnp.int32, shape, 1)
        lane = jax.lax.broadcasted_iota(jnp.int32, shape, 2)
        flat = ((row * b + bat) * d + lane).astype(jnp.uint32)
        seed_u = seed_ref[0].astype(jnp.uint32)
        u = _hash_u32(flat + seed_u * jnp.uint32(0x9E3779B9))
        # keep with prob keep_prob: single unsigned compare, no float convert.
        thresh = jnp.uint32(min(int(round(keep_prob * 4294967296.0)), 4294967295))
        y = jnp.where(u < thresh, y * jnp.float32(1.0 / keep_prob), jnp.float32(0.0))

    o_ref[...] = y.astype(o_ref.dtype)


# ----------------------------------------------------------------------------
# Wrapper
# ----------------------------------------------------------------------------
def positional_encoding_forward(x, pe_table, *, dropout_p=0.1, seed=0, tile_s=None):
    """x: (seq_len, batch, d_model). Returns same shape/dtype."""
    S, B, D = x.shape
    keep_prob = float(1.0 - dropout_p)

    pe = pe_table[:S].astype(x.dtype)                     # (S, 1, D): no HBM broadcast
    seed_arr = jnp.asarray([seed], dtype=jnp.int32)

    # Tile the sequence axis only; ~2 MiB per x block keeps the pipelined
    # working set inside every generation's scoped-VMEM default while still
    # amortizing per-step grid overhead.
    if tile_s is None:
        bytes_per_row = B * D * x.dtype.itemsize
        tile_s = max(1, min(S, (2 * 1024 * 1024) // max(1, bytes_per_row)))
    grid = (pl.cdiv(S, tile_s),)

    kernel = functools.partial(_pe_dropout_kernel, keep_prob=keep_prob)
    out = pl.pallas_call(
        kernel,
        out_shape=jax.ShapeDtypeStruct((S, B, D), x.dtype),
        grid_spec=pltpu.PrefetchScalarGridSpec(
            num_scalar_prefetch=1,                         # dropout seed in SMEM
            grid=grid,
            in_specs=[
                pl.BlockSpec((tile_s, B, D), lambda i, seed: (i, 0, 0)),   # x
                pl.BlockSpec((tile_s, 1, D), lambda i, seed: (i, 0, 0)),   # pe slice
            ],
            out_specs=pl.BlockSpec((tile_s, B, D), lambda i, seed: (i, 0, 0)),
        ),
        compiler_params=pltpu.CompilerParams(
            dimension_semantics=("parallel",),             # shards across v7x's 2 TCs
        ),
    )(seed_arr, x, pe)
    return out


# ----------------------------------------------------------------------------
# Demo / self-check
# ----------------------------------------------------------------------------
if __name__ == "__main__":
    d_model = 32
    max_len = 64          # small, but semantics identical to max_len=5000
    seq_len = 8
    batch = 2

    key = jax.random.PRNGKey(0)
    x = jax.random.normal(key, (seq_len, batch, d_model), dtype=jnp.float32)
    pe_table = make_positional_encoding_table(max_len, d_model)

    ref = np.asarray(x + pe_table[:seq_len])

    # Eval-style check (dropout_p=0): kernel output must equal x + pe exactly.
    y0 = positional_encoding_forward(x, pe_table, dropout_p=0.0, seed=0)
    y0 = np.asarray(jax.block_until_ready(y0))
    assert np.allclose(y0, ref, atol=1e-6, rtol=1e-6)

    # Training-style forward with p=0.1 dropout: every element must be either
    # dropped (0) or kept and scaled by 1/(1-p).
    p = 0.1
    y1 = positional_encoding_forward(x, pe_table, dropout_p=p, seed=1234)
    y1 = np.asarray(jax.block_until_ready(y1))
    assert y1.shape == (seq_len, batch, d_model)
    scaled = ref / (1.0 - p)
    ok = np.isclose(y1, 0.0, atol=1e-6) | np.isclose(y1, scaled, atol=1e-5, rtol=1e-5)
    assert np.all(ok)

    print("KERNEL_OK")
</pallas_src>

<mosaic_0001>
module attributes {stable_mosaic.version = 11 : i64} {
  func.func @_pe_dropout_kernel(%arg0: i32, %arg1: memref<1xi32, #tpu.memory_space<smem>>, %arg2: memref<8x2x32xf32, #tpu.memory_space<vmem>>, %arg3: memref<8x1x32xf32, #tpu.memory_space<vmem>>, %arg4: memref<8x2x32xf32, #tpu.memory_space<vmem>>) attributes {dimension_semantics = [#tpu.dimension_semantics<parallel>], iteration_bounds = array<i64: 1>, scalar_prefetch = 1 : i64, scratch_operands = 0 : i64, tpu.core_type = #tpu.core_type<tc>, window_params = [{transform_indices = @transform_0, window_bounds = array<i64: 8, 2, 32>}, {transform_indices = @transform_1, window_bounds = array<i64: 8, 1, 32>}, {transform_indices = @transform_2, window_bounds = array<i64: 8, 2, 32>}]} {
    %c0 = arith.constant 0 : index
    %c0_0 = arith.constant 0 : index
    %c0_1 = arith.constant 0 : index
    %0 = vector.load %arg2[%c0, %c0_0, %c0_1] : memref<8x2x32xf32, #tpu.memory_space<vmem>>, vector<8x2x32xf32>
    %c0_2 = arith.constant 0 : index
    %c0_3 = arith.constant 0 : index
    %c0_4 = arith.constant 0 : index
    %1 = vector.load %arg3[%c0_2, %c0_3, %c0_4] : memref<8x1x32xf32, #tpu.memory_space<vmem>>, vector<8x1x32xf32>
    %2 = vector.broadcast %1 : vector<8x1x32xf32> to vector<8x2x32xf32>
    %3 = arith.addf %0, %2 : vector<8x2x32xf32>
    %c0_5 = arith.constant 0 : index
    %c0_6 = arith.constant 0 : index
    %c0_7 = arith.constant 0 : index
    %4 = vector.load %arg4[%c0_5, %c0_6, %c0_7] : memref<8x2x32xf32, #tpu.memory_space<vmem>>, vector<8x2x32xf32>
    tpu.vector_store %arg4[%c0_5, %c0_6, %c0_7], %3 {strides = array<i32>} : memref<8x2x32xf32, #tpu.memory_space<vmem>>, vector<8x2x32xf32>,
    return
  }
  func.func @transform_0(%arg0: i32, %arg1: memref<1xi32, #tpu.memory_space<smem>>) -> (i32, i32, i32) {
    %c0_i32 = arith.constant 0 : i32
    %c0_i32_0 = arith.constant 0 : i32
    %c0_i32_1 = arith.constant 0 : i32
    return %arg0, %c0_i32, %c0_i32_0 : i32, i32, i32
  }
  func.func @transform_1(%arg0: i32, %arg1: memref<1xi32, #tpu.memory_space<smem>>) -> (i32, i32, i32) {
    %c0_i32 = arith.constant 0 : i32
    %c0_i32_0 = arith.constant 0 : i32
    %c0_i32_1 = arith.constant 0 : i32
    return %arg0, %c0_i32, %c0_i32_0 : i32, i32, i32
  }
  func.func @transform_2(%arg0: i32, %arg1: memref<1xi32, #tpu.memory_space<smem>>) -> (i32, i32, i32) {
    %c0_i32 = arith.constant 0 : i32
    %c0_i32_0 = arith.constant 0 : i32
    %c0_i32_1 = arith.constant 0 : i32
    return %arg0, %c0_i32, %c0_i32_0 : i32, i32, i32
  }
}

</mosaic_0001>

<llo_original>
// kernel: tpu_custom_call.1
$region0: #{tpu_custom_call.1}
  #allocation0 [shape = 'u32[]', space=smem, size = 0x4, offset = 0x4, fixed_abs, tag = 'smem constant byte address 0x4 - core index']
  #allocation1 [shape = 'u32[72,128]{1,0:T(1,128)}', space=vmem, size = 0x9000, scoped, tag = 'internal scratch']
  #allocation2 [shape = 's32[1]{0}', space=sflag, size = 0x4, scoped, tag = 'scoped memory for tpu_custom_call.1']
  #allocation3 [shape = 's32[1]{0:T(128)S(6)}', space=smem, size = 0x200, scoped, tag = 'prefetched SMEM operand 0']
  %s0 = inlined_call_operand.<no memory space> [shape: s32[1], index: 0, kind: input, shape index: {}]
  %s1 = inlined_call_operand.hbm [shape: f32[8,2,32], index: 1, kind: input, shape index: {}]
  %s2 = inlined_call_operand.hbm [shape: f32[8,1,32], index: 2, kind: input, shape index: {}]
  %s3 = inlined_call_operand.hbm [shape: f32[8,2,32], index: 3, kind: output, shape index: {}]
  %s4 = sld [smem:[#allocation0]]
  $region26: #{tpu_custom_call.1} parent=0
    _
  %s6 = ssub.s32 1, %s4
  %s7 = scalar_select 0, %s6, %s4
  %8 = sst [smem:[#allocation3]] %s0
  $region1: #{tpu_custom_call.1} parent=0
    #allocation4 [shape = 'u8[8192]{0}', space=vmem, size = 0x2000, scoped, tag = 'input window, operand 1, single buffered']
    #allocation5 [shape = 's32[1]{0}', space=sflag, size = 0x4, scoped, tag = 'scoped memory for tpu_custom_call.1']
    #allocation6 [shape = 's32[1]{0}', space=sflag, size = 0x4, scoped, tag = 'scoped memory for tpu_custom_call.1']
    #allocation7 [shape = 'u8[4096]{0}', space=vmem, size = 0x1000, scoped, tag = 'input window, operand 2, single buffered']
    #allocation8 [shape = 's32[1]{0}', space=sflag, size = 0x4, scoped, tag = 'scoped memory for tpu_custom_call.1']
    #allocation9 [shape = 'u8[8192]{0}', space=vmem, size = 0x2000, scoped, tag = 'output window, operand 0, single buffered']
    %9 = vsyncpa [#allocation5], 0
    %10 = vsyncpa [#allocation8], 0
    %11 = vsyncpa [#allocation6], 0
    // Predicated region
    $region2: #{tpu_custom_call.1} parent=1 // pred_check
      _
    $region3: #{tpu_custom_call.1} parent=1 // pred_check_branch
      %13 = sbr.rel (0) target = $region5
    $region4: #{tpu_custom_call.1} parent=1 // pred_region
      %15 = vsyncadd [#allocation5], 0
      %s16 = sshll.u32 %s1, 4
      %s17 = int_to_ptr.hbm [resolvable:$true] %s16
      %s18 = sshll.u32 [#allocation4], 4
      %s19 = int_to_ptr.vmem [resolvable:$true] %s18
      %24 = dma.hbm_to_vmem [thread:$0]  %s17, 256, %s19, [#allocation5], 32, 32, 2
    $region5: #{tpu_custom_call.1} parent=1 // pred_fallthru
      _
    // Predicated region
    $region6: #{tpu_custom_call.1} parent=1 // pred_check
      _
    $region7: #{tpu_custom_call.1} parent=1 // pred_check_branch
      %26 = sbr.rel (0) target = $region9
    $region8: #{tpu_custom_call.1} parent=1 // pred_region
      %28 = vsyncadd [#allocation8], 0
      %s29 = sshll.u32 %s2, 4
      %s30 = int_to_ptr.hbm [resolvable:$true] %s29
      %s31 = sshll.u32 [#allocation7], 4
      %s32 = int_to_ptr.vmem [resolvable:$true] %s31
      %37 = dma.hbm_to_vmem [thread:$0]  %s30, 128, %s32, [#allocation8], 16, 16, 1
    $region9: #{tpu_custom_call.1} parent=1 // pred_fallthru
      _
    // Predicated region
    $region10: #{tpu_custom_call.1} parent=1 // pred_check
      _
    $region11: #{tpu_custom_call.1} parent=1 // pred_check_branch
      %39 = sbr.rel (0) target = $region13
    $region12: #{tpu_custom_call.1} parent=1 // pred_region
      %41 = dma.done [#allocation5], 256
    $region13: #{tpu_custom_call.1} parent=1 // pred_fallthru
      _
    // Predicated region
    $region14: #{tpu_custom_call.1} parent=1 // pred_check
      _
    $region15: #{tpu_custom_call.1} parent=1 // pred_check_branch
      %43 = sbr.rel (0) target = $region17
    $region16: #{tpu_custom_call.1} parent=1 // pred_region
      %45 = dma.done [#allocation8], 128
    $region17: #{tpu_custom_call.1} parent=1 // pred_fallthru
      _
    %v46 = vld [vmem:[#allocation4] sm:$0x3]
    %v47 = vld [vmem:[#allocation4 + $0x2] sm:$0x3]
    %v48 = vld [vmem:[#allocation4 + $0x4] sm:$0x3]
    %v49 = vld [vmem:[#allocation4 + $0x6] sm:$0x3]
    %v50 = vld [vmem:[#allocation4 + $0x8] sm:$0x3]
    %v51 = vld [vmem:[#allocation4 + $0xa] sm:$0x3]
    %v52 = vld [vmem:[#allocation4 + $0xc] sm:$0x3]
    %v53 = vld [vmem:[#allocation4 + $0xe] sm:$0x3]
    %v54 = vld [vmem:[#allocation7] sm:$0x1]
    %v55 = vld [vmem:[#allocation7 + $0x1] sm:$0x1]
    %v56 = vld [vmem:[#allocation7 + $0x2] sm:$0x1]
    %v57 = vld [vmem:[#allocation7 + $0x3] sm:$0x1]
    %v58 = vld [vmem:[#allocation7 + $0x4] sm:$0x1]
    %v59 = vld [vmem:[#allocation7 + $0x5] sm:$0x1]
    %v60 = vld [vmem:[#allocation7 + $0x6] sm:$0x1]
    %v61 = vld [vmem:[#allocation7 + $0x7] sm:$0x1]
    %v70 = vperm.slane %v54, 0
    %v71 = vperm.slane %v55, 0
    %v72 = vperm.slane %v56, 0
    %v73 = vperm.slane %v57, 0
    %v74 = vperm.slane %v58, 0
    %v75 = vperm.slane %v59, 0
    %v76 = vperm.slane %v60, 0
    %v77 = vperm.slane %v61, 0
    %v86 = vadd.f32 %v46, %v70
    %v87 = vadd.f32 %v47, %v71
    %v88 = vadd.f32 %v48, %v72
    %v89 = vadd.f32 %v49, %v73
    %v90 = vadd.f32 %v50, %v74
    %v91 = vadd.f32 %v51, %v75
    %v92 = vadd.f32 %v52, %v76
    %v93 = vadd.f32 %v53, %v77
    %vm94 = vcmask 254976
    %95 = vst.msk [vmem:[#allocation9] sm:$0x3] %vm94, %v86
    %96 = vst.msk [vmem:[#allocation9 + $0x2] sm:$0x3] %vm94, %v87
    %97 = vst.msk [vmem:[#allocation9 + $0x4] sm:$0x3] %vm94, %v88
    %98 = vst.msk [vmem:[#allocation9 + $0x6] sm:$0x3] %vm94, %v89
    %99 = vst.msk [vmem:[#allocation9 + $0x8] sm:$0x3] %vm94, %v90
    %100 = vst.msk [vmem:[#allocation9 + $0xa] sm:$0x3] %vm94, %v91
    %101 = vst.msk [vmem:[#allocation9 + $0xc] sm:$0x3] %vm94, %v92
    %102 = vst.msk [vmem:[#allocation9 + $0xe] sm:$0x3] %vm94, %v93
    // Predicated region
    $region18: #{tpu_custom_call.1} parent=1 // pred_check
      _
    $region19: #{tpu_custom_call.1} parent=1 // pred_check_branch
      %104 = sbr.rel (0) target = $region21
    $region20: #{tpu_custom_call.1} parent=1 // pred_region
      %106 = vsyncadd [#allocation6], 0
      %s107 = sshll.u32 [#allocation9], 4
      %s108 = int_to_ptr.vmem [resolvable:$true] %s107
      %s109 = sshll.u32 %s3, 4
      %s110 = int_to_ptr.hbm [resolvable:$true] %s109
      %115 = dma.vmem_to_hbm [thread:$0]  %s108, 256, %s110, [#allocation6], 32, 32, 2
    $region21: #{tpu_custom_call.1} parent=1 // pred_fallthru
      _
    // Predicated region
    $region22: #{tpu_custom_call.1} parent=1 // pred_check
      _
    $region23: #{tpu_custom_call.1} parent=1 // pred_check_branch
      %117 = sbr.rel (0) target = $region25
    $region24: #{tpu_custom_call.1} parent=1 // pred_region
      %119 = dma.done [#allocation6], 256
    $region25: #{tpu_custom_call.1} parent=1 // pred_fallthru
      _
    %120 = vsyncpa [#allocation5], 1
    %121 = vsyncpa [#allocation8], 1
    %122 = vsyncpa [#allocation6], 1

</llo_original>
